<compile_context>
chip_gen: v7x
topology: tpu7x:2x2x1
jax: 0.10.0
libtpu: 0.0.40
codegen_flags: <defaults>
</compile_context>

<pallas_src>
import jax
import jax.numpy as jnp
from jax.experimental import pallas as pl
from jax.experimental.pallas import tpu as pltpu

HPAD = 128   # hidden dim padded 64 -> 128 lanes
OPAD = 128   # output dim padded 1  -> 128 lanes (sliced back in the wrapper)


def qnet_kernel(s_ref, a_ref, w1s_ref, w1a_ref, b1_ref, w2_ref, b2_ref,
                w3_ref, b3_ref, o_ref):
    # Concat is fused: first layer computed as s @ W1_s + a @ W1_a + b1.
    s = s_ref[...].astype(jnp.bfloat16)                               # [TB, 4]
    a = a_ref[...].astype(jnp.bfloat16)                               # [TB, 2]

    h1 = (jnp.dot(s, w1s_ref[...], preferred_element_type=jnp.float32)
          + jnp.dot(a, w1a_ref[...], preferred_element_type=jnp.float32)
          + b1_ref[...])                                              # [TB, 128] f32
    h1 = jnp.maximum(h1, 0.0)                                         # ReLU in f32

    h2 = jnp.dot(h1.astype(jnp.bfloat16), w2_ref[...],
                 preferred_element_type=jnp.float32) + b2_ref[...]    # [TB, 128]
    h2 = jnp.maximum(h2, 0.0)

    y = jnp.dot(h2.astype(jnp.bfloat16), w3_ref[...],
                preferred_element_type=jnp.float32) + b3_ref[...]     # [TB, 128]
    o_ref[...] = y.astype(o_ref.dtype)


def prepare_params(params, input_split=4):
    """One-time: split W1 by (state, action), zero-pad features to 128 lanes,
    store matmul operands in bf16 and biases in f32."""
    w1, b1, w2, b2, w3, b3 = params
    in_dim, hid = w1.shape
    out_dim = w3.shape[1]

    def pad2(x, rows, cols, dtype):
        return jnp.pad(x, ((0, rows - x.shape[0]), (0, cols - x.shape[1]))
                       ).astype(dtype)

    w1s = pad2(w1[:input_split], input_split, HPAD, jnp.bfloat16)     # [4, 128]
    w1a = pad2(w1[input_split:], in_dim - input_split, HPAD, jnp.bfloat16)  # [2,128]
    b1p = pad2(b1, 1, HPAD, jnp.float32)                              # [1, 128]
    w2p = pad2(w2, HPAD, HPAD, jnp.bfloat16)                          # [128, 128]
    b2p = pad2(b2, 1, HPAD, jnp.float32)                              # [1, 128]
    w3p = pad2(w3, HPAD, OPAD, jnp.bfloat16)                          # [128, 128]
    b3p = pad2(b3, 1, OPAD, jnp.float32)                              # [1, 128]
    del hid, out_dim
    return (w1s, w1a, b1p, w2p, b2p, w3p, b3p)


def qnet_forward(s, a, kernel_params, *, max_tb=256):
    """s: [B, 4], a: [B, 2] -> q: [B, 1]  (matches QNet.forward)."""
    w1s, w1a, b1, w2, b2, w3, b3 = kernel_params
    B = s.shape[0]

    # Batch tiling: pad B to a multiple of 8 (sublane) and tile by TB rows.
    if B <= max_tb:
        tb = pl.cdiv(B, 8) * 8
    else:
        tb = max_tb
    b_pad = pl.cdiv(B, tb) * tb
    if b_pad != B:
        s = jnp.pad(s, ((0, b_pad - B), (0, 0)))
        a = jnp.pad(a, ((0, b_pad - B), (0, 0)))
    grid = (b_pad // tb,)

    def batch_spec(cols):
        return pl.BlockSpec((tb, cols), lambda i: (i, 0))

    def resident(arr):                       # weights/biases: same block every step
        return pl.BlockSpec(arr.shape, lambda i: (0, 0))

    out = pl.pallas_call(
        qnet_kernel,
        out_shape=jax.ShapeDtypeStruct((b_pad, OPAD), jnp.float32),
        grid=grid,
        in_specs=[
            batch_spec(s.shape[1]), batch_spec(a.shape[1]),
            resident(w1s), resident(w1a), resident(b1),
            resident(w2), resident(b2),
            resident(w3), resident(b3),
        ],
        out_specs=pl.BlockSpec((tb, OPAD), lambda i: (i, 0)),
        compiler_params=pltpu.CompilerParams(
            dimension_semantics=("parallel",)),
    )(s, a, w1s, w1a, b1, w2, b2, w3, b3)

    return out[:B, :1]                       # strip batch + lane padding


def init_params(key, input_dim=6, hidden_dim=64, output_dim=1):
    """Deterministic init mimicking nn.Linear's U(-1/sqrt(fan_in), 1/sqrt(fan_in))."""
    ks = jax.random.split(key, 6)

    def layer(kw, kb, fan_in, fan_out):
        bound = 1.0 / jnp.sqrt(fan_in)
        w = jax.random.uniform(kw, (fan_in, fan_out), jnp.float32, -bound, bound)
        b = jax.random.uniform(kb, (1, fan_out), jnp.float32, -bound, bound)
        return w, b

    w1, b1 = layer(ks[0], ks[1], input_dim, hidden_dim)
    w2, b2 = layer(ks[2], ks[3], hidden_dim, hidden_dim)
    w3, b3 = layer(ks[4], ks[5], hidden_dim, output_dim)
    return (w1, b1, w2, b2, w3, b3)


if __name__ == "__main__":
    key = jax.random.PRNGKey(0)
    k_s, k_a, k_p = jax.random.split(key, 3)

    B = 8
    s = jax.random.normal(k_s, (B, 4), jnp.float32)   # state
    a = jax.random.normal(k_a, (B, 2), jnp.float32)   # action
    params = init_params(k_p)
    kparams = prepare_params(params)                  # one-time pad + bf16 cast

    q = qnet_forward(s, a, kparams)
    jax.block_until_ready(q)
    assert q.shape == (B, 1)

    # Reference 1: exact same bf16/f32 math path in plain JAX (tight tolerance).
    w1s, w1a, b1p, w2p, b2p, w3p, b3p = kparams
    sb, ab = s.astype(jnp.bfloat16), a.astype(jnp.bfloat16)
    h1 = jnp.maximum(jnp.dot(sb, w1s, preferred_element_type=jnp.float32)
                     + jnp.dot(ab, w1a, preferred_element_type=jnp.float32)
                     + b1p, 0.0)
    h2 = jnp.maximum(jnp.dot(h1.astype(jnp.bfloat16), w2p,
                             preferred_element_type=jnp.float32) + b2p, 0.0)
    ref_bf16 = (jnp.dot(h2.astype(jnp.bfloat16), w3p,
                        preferred_element_type=jnp.float32) + b3p)[:, :1]
    assert jnp.allclose(q, ref_bf16, atol=1e-3, rtol=1e-3)

    # Reference 2: full-precision f32 QNet semantics (loose tolerance: bf16 MXU).
    w1, b1, w2, b2, w3, b3 = params
    x = jnp.concatenate([s, a], axis=-1)
    ref_f32 = jnp.maximum(jnp.maximum(x @ w1 + b1, 0.0) @ w2 + b2, 0.0) @ w3 + b3
    assert jnp.allclose(q, ref_f32, atol=5e-2, rtol=5e-2)

    print("KERNEL_OK")
</pallas_src>

<mosaic_0001>
module attributes {stable_mosaic.version = 11 : i64} {
  func.func @qnet_kernel(%arg0: i32, %arg1: memref<8x4xf32, #tpu.memory_space<vmem>>, %arg2: memref<8x2xf32, #tpu.memory_space<vmem>>, %arg3: memref<4x128xbf16, #tpu.memory_space<vmem>>, %arg4: memref<2x128xbf16, #tpu.memory_space<vmem>>, %arg5: memref<1x128xf32, #tpu.memory_space<vmem>>, %arg6: memref<128x128xbf16, #tpu.memory_space<vmem>>, %arg7: memref<1x128xf32, #tpu.memory_space<vmem>>, %arg8: memref<128x128xbf16, #tpu.memory_space<vmem>>, %arg9: memref<1x128xf32, #tpu.memory_space<vmem>>, %arg10: memref<8x128xf32, #tpu.memory_space<vmem>>) attributes {dimension_semantics = [#tpu.dimension_semantics<parallel>], iteration_bounds = array<i64: 1>, scalar_prefetch = 0 : i64, scratch_operands = 0 : i64, tpu.core_type = #tpu.core_type<tc>, window_params = [{transform_indices = @transform_0, window_bounds = array<i64: 8, 4>}, {transform_indices = @transform_1, window_bounds = array<i64: 8, 2>}, {pipeline_mode = #tpu.pipeline_mode<synchronous>, transform_indices = @transform_2, window_bounds = array<i64: 4, 128>}, {pipeline_mode = #tpu.pipeline_mode<synchronous>, transform_indices = @transform_3, window_bounds = array<i64: 2, 128>}, {pipeline_mode = #tpu.pipeline_mode<synchronous>, transform_indices = @transform_4, window_bounds = array<i64: 1, 128>}, {pipeline_mode = #tpu.pipeline_mode<synchronous>, transform_indices = @transform_5, window_bounds = array<i64: 128, 128>}, {pipeline_mode = #tpu.pipeline_mode<synchronous>, transform_indices = @transform_6, window_bounds = array<i64: 1, 128>}, {pipeline_mode = #tpu.pipeline_mode<synchronous>, transform_indices = @transform_7, window_bounds = array<i64: 128, 128>}, {pipeline_mode = #tpu.pipeline_mode<synchronous>, transform_indices = @transform_8, window_bounds = array<i64: 1, 128>}, {transform_indices = @transform_9, window_bounds = array<i64: 8, 128>}]} {
    %c0 = arith.constant 0 : index
    %c0_0 = arith.constant 0 : index
    %0 = vector.load %arg1[%c0, %c0_0] : memref<8x4xf32, #tpu.memory_space<vmem>>, vector<8x4xf32>
    %1 = arith.truncf %0 : vector<8x4xf32> to vector<8x4xbf16>
    %c0_1 = arith.constant 0 : index
    %c0_2 = arith.constant 0 : index
    %2 = vector.load %arg2[%c0_1, %c0_2] : memref<8x2xf32, #tpu.memory_space<vmem>>, vector<8x2xf32>
    %3 = arith.truncf %2 : vector<8x2xf32> to vector<8x2xbf16>
    %c0_3 = arith.constant 0 : index
    %c0_4 = arith.constant 0 : index
    %4 = vector.load %arg3[%c0_3, %c0_4] : memref<4x128xbf16, #tpu.memory_space<vmem>>, vector<4x128xbf16>
    %cst = arith.constant dense<0.000000e+00> : vector<8x128xf32>
    %5 = tpu.matmul %1, %4, %cst {dimension_numbers = #tpu.dot_dimension_numbers<[1], [0], [0], [1], [0, 0, 1, 1], [], []>} : vector<8x4xbf16>, vector<4x128xbf16>, vector<8x128xf32> -> vector<8x128xf32>
    %c0_5 = arith.constant 0 : index
    %c0_6 = arith.constant 0 : index
    %6 = vector.load %arg4[%c0_5, %c0_6] : memref<2x128xbf16, #tpu.memory_space<vmem>>, vector<2x128xbf16>
    %cst_7 = arith.constant dense<0.000000e+00> : vector<8x128xf32>
    %7 = tpu.matmul %3, %6, %cst_7 {dimension_numbers = #tpu.dot_dimension_numbers<[1], [0], [0], [1], [0, 0, 1, 1], [], []>} : vector<8x2xbf16>, vector<2x128xbf16>, vector<8x128xf32> -> vector<8x128xf32>
    %8 = arith.addf %5, %7 : vector<8x128xf32>
    %c0_8 = arith.constant 0 : index
    %c0_9 = arith.constant 0 : index
    %9 = vector.load %arg5[%c0_8, %c0_9] : memref<1x128xf32, #tpu.memory_space<vmem>>, vector<1x128xf32>
    %10 = vector.broadcast %9 : vector<1x128xf32> to vector<8x128xf32>
    %11 = arith.addf %8, %10 : vector<8x128xf32>
    %cst_10 = arith.constant 0.000000e+00 : f32
    %12 = vector.broadcast %cst_10 : f32 to vector<8x128xf32>
    %13 = arith.maximumf %11, %12 : vector<8x128xf32>
    %14 = arith.truncf %13 : vector<8x128xf32> to vector<8x128xbf16>
    %c0_11 = arith.constant 0 : index
    %c0_12 = arith.constant 0 : index
    %15 = vector.load %arg6[%c0_11, %c0_12] : memref<128x128xbf16, #tpu.memory_space<vmem>>, vector<128x128xbf16>
    %cst_13 = arith.constant dense<0.000000e+00> : vector<8x128xf32>
    %16 = tpu.matmul %14, %15, %cst_13 {dimension_numbers = #tpu.dot_dimension_numbers<[1], [0], [0], [1], [0, 0, 1, 1], [], []>} : vector<8x128xbf16>, vector<128x128xbf16>, vector<8x128xf32> -> vector<8x128xf32>
    %c0_14 = arith.constant 0 : index
    %c0_15 = arith.constant 0 : index
    %17 = vector.load %arg7[%c0_14, %c0_15] : memref<1x128xf32, #tpu.memory_space<vmem>>, vector<1x128xf32>
    %18 = vector.broadcast %17 : vector<1x128xf32> to vector<8x128xf32>
    %19 = arith.addf %16, %18 : vector<8x128xf32>
    %cst_16 = arith.constant 0.000000e+00 : f32
    %20 = vector.broadcast %cst_16 : f32 to vector<8x128xf32>
    %21 = arith.maximumf %19, %20 : vector<8x128xf32>
    %22 = arith.truncf %21 : vector<8x128xf32> to vector<8x128xbf16>
    %c0_17 = arith.constant 0 : index
    %c0_18 = arith.constant 0 : index
    %23 = vector.load %arg8[%c0_17, %c0_18] : memref<128x128xbf16, #tpu.memory_space<vmem>>, vector<128x128xbf16>
    %cst_19 = arith.constant dense<0.000000e+00> : vector<8x128xf32>
    %24 = tpu.matmul %22, %23, %cst_19 {dimension_numbers = #tpu.dot_dimension_numbers<[1], [0], [0], [1], [0, 0, 1, 1], [], []>} : vector<8x128xbf16>, vector<128x128xbf16>, vector<8x128xf32> -> vector<8x128xf32>
    %c0_20 = arith.constant 0 : index
    %c0_21 = arith.constant 0 : index
    %25 = vector.load %arg9[%c0_20, %c0_21] : memref<1x128xf32, #tpu.memory_space<vmem>>, vector<1x128xf32>
    %26 = vector.broadcast %25 : vector<1x128xf32> to vector<8x128xf32>
    %27 = arith.addf %24, %26 : vector<8x128xf32>
    %c0_22 = arith.constant 0 : index
    %c0_23 = arith.constant 0 : index
    %28 = vector.load %arg10[%c0_22, %c0_23] : memref<8x128xf32, #tpu.memory_space<vmem>>, vector<8x128xf32>
    tpu.vector_store %arg10[%c0_22, %c0_23], %27 {strides = array<i32>} : memref<8x128xf32, #tpu.memory_space<vmem>>, vector<8x128xf32>,
    return
  }
  func.func @transform_0(%arg0: i32) -> (i32, i32) {
    %c0_i32 = arith.constant 0 : i32
    %c0_i32_0 = arith.constant 0 : i32
    return %arg0, %c0_i32 : i32, i32
  }
  func.func @transform_1(%arg0: i32) -> (i32, i32) {
    %c0_i32 = arith.constant 0 : i32
    %c0_i32_0 = arith.constant 0 : i32
    return %arg0, %c0_i32 : i32, i32
  }
  func.func @transform_2(%arg0: i32) -> (i32, i32) {
    %c0_i32 = arith.constant 0 : i32
    %c0_i32_0 = arith.constant 0 : i32
    %c0_i32_1 = arith.constant 0 : i32
    return %c0_i32, %c0_i32_0 : i32, i32
  }
  func.func @transform_3(%arg0: i32) -> (i32, i32) {
    %c0_i32 = arith.constant 0 : i32
    %c0_i32_0 = arith.constant 0 : i32
    %c0_i32_1 = arith.constant 0 : i32
    return %c0_i32, %c0_i32_0 : i32, i32
  }
  func.func @transform_4(%arg0: i32) -> (i32, i32) {
    %c0_i32 = arith.constant 0 : i32
    %c0_i32_0 = arith.constant 0 : i32
    %c0_i32_1 = arith.constant 0 : i32
    return %c0_i32, %c0_i32_0 : i32, i32
  }
  func.func @transform_5(%arg0: i32) -> (i32, i32) {
    %c0_i32 = arith.constant 0 : i32
    %c0_i32_0 = arith.constant 0 : i32
    %c0_i32_1 = arith.constant 0 : i32
    return %c0_i32, %c0_i32_0 : i32, i32
  }
  func.func @transform_6(%arg0: i32) -> (i32, i32) {
    %c0_i32 = arith.constant 0 : i32
    %c0_i32_0 = arith.constant 0 : i32
    %c0_i32_1 = arith.constant 0 : i32
    return %c0_i32, %c0_i32_0 : i32, i32
  }
  func.func @transform_7(%arg0: i32) -> (i32, i32) {
    %c0_i32 = arith.constant 0 : i32
    %c0_i32_0 = arith.constant 0 : i32
    %c0_i32_1 = arith.constant 0 : i32
    return %c0_i32, %c0_i32_0 : i32, i32
  }
  func.func @transform_8(%arg0: i32) -> (i32, i32) {
    %c0_i32 = arith.constant 0 : i32
    %c0_i32_0 = arith.constant 0 : i32
    %c0_i32_1 = arith.constant 0 : i32
    return %c0_i32, %c0_i32_0 : i32, i32
  }
  func.func @transform_9(%arg0: i32) -> (i32, i32) {
    %c0_i32 = arith.constant 0 : i32
    %c0_i32_0 = arith.constant 0 : i32
    return %arg0, %c0_i32 : i32, i32
  }
}

</mosaic_0001>

<llo_original>
// kernel: tpu_custom_call.1
$region0: #{tpu_custom_call.1}
  #allocation0 [shape = 'u32[]', space=smem, size = 0x4, offset = 0x4, fixed_abs, tag = 'smem constant byte address 0x4 - core index']
  #allocation1 [shape = 'u32[144,128]{1,0:T(1,128)}', space=vmem, size = 0x12000, scoped, tag = 'internal scratch']
  %s0 = inlined_call_operand.vmem [shape: f32[8,4], index: 0, kind: input, shape index: {}]
  %s1 = inlined_call_operand.vmem [shape: f32[8,2], index: 1, kind: input, shape index: {}]
  %s2 = inlined_call_operand.vmem [shape: bf16[4,128], index: 2, kind: input, shape index: {}]
  %s3 = inlined_call_operand.vmem [shape: bf16[2,128], index: 3, kind: input, shape index: {}]
  %s4 = inlined_call_operand.vmem [shape: f32[1,128], index: 4, kind: input, shape index: {}]
  %s5 = inlined_call_operand.hbm [shape: bf16[128,128], index: 5, kind: input, shape index: {}]
  %s6 = inlined_call_operand.vmem [shape: f32[1,128], index: 6, kind: input, shape index: {}]
  %s7 = inlined_call_operand.hbm [shape: bf16[128,128], index: 7, kind: input, shape index: {}]
  %s8 = inlined_call_operand.vmem [shape: f32[1,128], index: 8, kind: input, shape index: {}]
  %s9 = inlined_call_operand.hbm [shape: f32[8,128], index: 9, kind: output, shape index: {}]
  %s10 = sld [smem:[#allocation0]]
  $region54: #{tpu_custom_call.1} parent=0
    _
  %s12 = ssub.s32 1, %s10
  %s13 = scalar_select 0, %s12, %s10
  $region1: #{tpu_custom_call.1} parent=0
    #allocation2 [shape = 'u8[32768]{0}', space=vmem, size = 0x8000, scoped, tag = 'input window, operand 5, single buffered']
    #allocation3 [shape = 's32[1]{0}', space=sflag, size = 0x4, scoped, tag = 'scoped memory for tpu_custom_call.1']
    #allocation4 [shape = 's32[1]{0}', space=sflag, size = 0x4, scoped, tag = 'scoped memory for tpu_custom_call.1']
    #allocation5 [shape = 'u8[32768]{0}', space=vmem, size = 0x8000, scoped, tag = 'input window, operand 7, single buffered']
    #allocation6 [shape = 's32[1]{0}', space=sflag, size = 0x4, scoped, tag = 'scoped memory for tpu_custom_call.1']
    #allocation7 [shape = 'u8[4096]{0}', space=vmem, size = 0x1000, scoped, tag = 'output window, operand 0, single buffered']
    %14 = vsyncpa [#allocation3], 0
    %15 = vsyncpa [#allocation6], 0
    %16 = vsyncpa [#allocation4], 0
    // Predicated region
    $region2: #{tpu_custom_call.1} parent=1 // pred_check
      _
    $region3: #{tpu_custom_call.1} parent=1 // pred_check_branch
      %18 = sbr.rel (0) target = $region5
    $region4: #{tpu_custom_call.1} parent=1 // pred_region
      _
    $region5: #{tpu_custom_call.1} parent=1 // pred_fallthru
      _
    // Predicated region
    $region6: #{tpu_custom_call.1} parent=1 // pred_check
      _
    $region7: #{tpu_custom_call.1} parent=1 // pred_check_branch
      %20 = sbr.rel (0) target = $region9
    $region8: #{tpu_custom_call.1} parent=1 // pred_region
      _
    $region9: #{tpu_custom_call.1} parent=1 // pred_fallthru
      _
    // Predicated region
    $region10: #{tpu_custom_call.1} parent=1 // pred_check
      _
    $region11: #{tpu_custom_call.1} parent=1 // pred_check_branch
      %22 = sbr.rel (0) target = $region13
    $region12: #{tpu_custom_call.1} parent=1 // pred_region
      _
    $region13: #{tpu_custom_call.1} parent=1 // pred_fallthru
      _
    // Predicated region
    $region14: #{tpu_custom_call.1} parent=1 // pred_check
      _
    $region15: #{tpu_custom_call.1} parent=1 // pred_check_branch
      %24 = sbr.rel (0) target = $region17
    $region16: #{tpu_custom_call.1} parent=1 // pred_region
      _
    $region17: #{tpu_custom_call.1} parent=1 // pred_fallthru
      _
    // Predicated region
    $region18: #{tpu_custom_call.1} parent=1 // pred_check
      _
    $region19: #{tpu_custom_call.1} parent=1 // pred_check_branch
      %26 = sbr.rel (0) target = $region21
    $region20: #{tpu_custom_call.1} parent=1 // pred_region
      _
    $region21: #{tpu_custom_call.1} parent=1 // pred_fallthru
      _
    // Predicated region
    $region22: #{tpu_custom_call.1} parent=1 // pred_check
      _
    $region23: #{tpu_custom_call.1} parent=1 // pred_check_branch
      %28 = sbr.rel (0) target = $region25
    $region24: #{tpu_custom_call.1} parent=1 // pred_region
      %s30 = ssub.s32 1024, 1024
      %31 = vsyncadd [#allocation3], %s30
      %s32 = sshll.u32 [#allocation2], 4
      %s33 = int_to_ptr.vmem [resolvable:$true] %s32
      %38 = dma.hbm_to_vmem [thread:$0]  %s5, 1024, %s33, [#allocation3], 64, 64, 4
    $region25: #{tpu_custom_call.1} parent=1 // pred_fallthru
      _
    // Predicated region
    $region26: #{tpu_custom_call.1} parent=1 // pred_check
      _
    $region27: #{tpu_custom_call.1} parent=1 // pred_check_branch
      %40 = sbr.rel (0) target = $region29
    $region28: #{tpu_custom_call.1} parent=1 // pred_region
      _
    $region29: #{tpu_custom_call.1} parent=1 // pred_fallthru
      _
    // Predicated region
    $region30: #{tpu_custom_call.1} parent=1 // pred_check
      _
    $region31: #{tpu_custom_call.1} parent=1 // pred_check_branch
      %42 = sbr.rel (0) target = $region33
    $region32: #{tpu_custom_call.1} parent=1 // pred_region
      %s44 = ssub.s32 1024, 1024
      %45 = vsyncadd [#allocation6], %s44
      %s46 = sshll.u32 [#allocation5], 4
      %s47 = int_to_ptr.vmem [resolvable:$true] %s46
      %52 = dma.hbm_to_vmem [thread:$0]  %s7, 1024, %s47, [#allocation6], 64, 64, 4
    $region33: #{tpu_custom_call.1} parent=1 // pred_fallthru
      _
    // Predicated region
    $region34: #{tpu_custom_call.1} parent=1 // pred_check
      _
    $region35: #{tpu_custom_call.1} parent=1 // pred_check_branch
      %54 = sbr.rel (0) target = $region37
    $region36: #{tpu_custom_call.1} parent=1 // pred_region
      _
    $region37: #{tpu_custom_call.1} parent=1 // pred_fallthru
      _
    // Predicated region
    $region38: #{tpu_custom_call.1} parent=1 // pred_check
      _
    $region39: #{tpu_custom_call.1} parent=1 // pred_check_branch
      %56 = sbr.rel (0) target = $region41
    $region40: #{tpu_custom_call.1} parent=1 // pred_region
      %57 = dma.done [#allocation3], 1024
    $region41: #{tpu_custom_call.1} parent=1 // pred_fallthru
      _
    // Predicated region
    $region42: #{tpu_custom_call.1} parent=1 // pred_check
      _
    $region43: #{tpu_custom_call.1} parent=1 // pred_check_branch
      %59 = sbr.rel (0) target = $region45
    $region44: #{tpu_custom_call.1} parent=1 // pred_region
      %60 = dma.done [#allocation6], 1024
    $region45: #{tpu_custom_call.1} parent=1 // pred_fallthru
      _
    %v62 = vld [vmem:[%s0] sm:$0xff]
    %v63 = vpack.c.bf16 %v62, %v62
    %v64 = vld [vmem:[%s1] sm:$0xff]
    %v65 = vpack.c.bf16 %v64, %v64
    %v66 = vld [vmem:[%s2] sm:$0x3]
    %v67 = vld [vmem:[%s3] sm:$0x1]
    %vm68 = vcmask 15360
    %v70 = vsel %vm68, %v65, 0
    %vm72 = vcmask 1040384
    %v74 = vsel %vm72, %v67, 0
    %76 = vmatprep.subr.bf16.mxu0 0
    %77 = vmatpush1.bf16.msra.mxu0 %v74
    %78 = vmatprep.subr.bf16.mxu0 0
    %79 = vmatpush1.bf16.msra.mxu0 0
    %80 = vmatprep.subr.bf16.mxu0 0
    %81 = vmatpush1.bf16.msra.mxu0 0
    %82 = vmatprep.subr.bf16.mxu0 0
    %83 = vmatpush1.bf16.msra.mxu0 0
    %84 = vmatprep.subr.bf16.mxu0 0
    %85 = vmatpush1.bf16.msra.mxu0 0
    %86 = vmatprep.subr.bf16.mxu0 0
    %87 = vmatpush1.bf16.msra.mxu0 0
    %88 = vmatprep.subr.bf16.mxu0 0
    %89 = vmatpush1.bf16.msra.mxu0 0
    %90 = vmatprep.subr.bf16.mxu0 0
    %91 = vmatpush1.bf16.msra.mxu0 0
    %92 = vmatprep.subr.bf16.mxu0 0
    %93 = vmatpush1.bf16.msra.mxu0 0
    %94 = vmatprep.subr.bf16.mxu0 0
    %95 = vmatpush1.bf16.msra.mxu0 0
    %96 = vmatprep.subr.bf16.mxu0 0
    %97 = vmatpush1.bf16.msra.mxu0 0
    %98 = vmatprep.subr.bf16.mxu0 0
    %99 = vmatpush1.bf16.msra.mxu0 0
    %100 = vmatprep.subr.bf16.mxu0 0
    %101 = vmatpush1.bf16.msra.mxu0 0
    %102 = vmatprep.subr.bf16.mxu0 0
    %103 = vmatpush1.bf16.msra.mxu0 0
    %104 = vmatprep.subr.bf16.mxu0 0
    %105 = vmatpush1.bf16.msra.mxu0 0
    %106 = vmatprep.subr.bf16.mxu0 0
    %107 = vmatpush1.bf16.msra.mxu0 0
    %108 = vmatprep.mubr.bf16.mxu0 0
    %109 = vmatmul.mubr.bf16.gmra.mrb[0].mxu0 %v70
    %v110 = vpop.f32.mrb[0].mxu0
    %v111 = vadd.f32 0.0, %v110
    %v112 = vpop.f32.mrb[0].mxu0
    %v113 = vpop.f32.mrb[0].mxu0
    %v114 = vpop.f32.mrb[0].mxu0
    %115 = vdwg.mxu0
    %vm116 = vcmask 31744
    %v118 = vsel %vm116, %v63, 0
    %vm120 = vcmask 1041408
    %v122 = vsel %vm120, %v66, 0
    %124 = vmatprep.subr.bf16.mxu0 0
    %125 = vmatpush1.bf16.msra.mxu0 %v122
    %126 = vmatprep.subr.bf16.mxu0 0
    %127 = vmatpush1.bf16.msra.mxu0 0
    %128 = vmatprep.subr.bf16.mxu0 0
    %129 = vmatpush1.bf16.msra.mxu0 0
    %130 = vmatprep.subr.bf16.mxu0 0
    %131 = vmatpush1.bf16.msra.mxu0 0
    %132 = vmatprep.subr.bf16.mxu0 0
    %133 = vmatpush1.bf16.msra.mxu0 0
    %134 = vmatprep.subr.bf16.mxu0 0
    %135 = vmatpush1.bf16.msra.mxu0 0
    %136 = vmatprep.subr.bf16.mxu0 0
    %137 = vmatpush1.bf16.msra.mxu0 0
    %138 = vmatprep.subr.bf16.mxu0 0
    %139 = vmatpush1.bf16.msra.mxu0 0
    %140 = vmatprep.subr.bf16.mxu0 0
    %141 = vmatpush1.bf16.msra.mxu0 0
    %142 = vmatprep.subr.bf16.mxu0 0
    %143 = vmatpush1.bf16.msra.mxu0 0
    %144 = vmatprep.subr.bf16.mxu0 0
    %145 = vmatpush1.bf16.msra.mxu0 0
    %146 = vmatprep.subr.bf16.mxu0 0
    %147 = vmatpush1.bf16.msra.mxu0 0
    %148 = vmatprep.subr.bf16.mxu0 0
    %149 = vmatpush1.bf16.msra.mxu0 0
    %150 = vmatprep.subr.bf16.mxu0 0
    %151 = vmatpush1.bf16.msra.mxu0 0
    %152 = vmatprep.subr.bf16.mxu0 0
    %153 = vmatpush1.bf16.msra.mxu0 0
    %154 = vmatprep.subr.bf16.mxu0 0
    %155 = vmatpush1.bf16.msra.mxu0 0
    %156 = vmatprep.mubr.bf16.mxu0 0
    %157 = vmatmul.mubr.bf16.gmra.mrb[0].mxu0 %v118
    %v158 = vpop.f32.mrb[0].mxu0
    %v159 = vadd.f32 %v111, %v158
    %v160 = vpop.f32.mrb[0].mxu0
    %v161 = vpop.f32.mrb[0].mxu0
    %v162 = vpop.f32.mrb[0].mxu0
    %163 = vdwg.mxu0
    %v164 = vld [vmem:[%s4] sm:$0x1]
    %v166 = vlaneseq
    %v167 = vshrl.u32 %v166, 7
    %v168 = vsub.s32 0, %v167
    %v169 = vrot.slane %v164, %v168
    %v171 = vadd.f32 %v159, %v169
    %v172 = vmax.f32 %v171, 0.0
    %v173 = vpack.c.bf16 %v172, %v172
    %v174 = vld [vmem:[#allocation2] sm:$0xf]
    %v175 = vld [vmem:[#allocation2 + $0x4] sm:$0xf]
    %v176 = vld [vmem:[#allocation2 + $0x8] sm:$0xf]
    %v177 = vld [vmem:[#allocation2 + $0xc] sm:$0xf]
    %v178 = vld [vmem:[#allocation2 + $0x10] sm:$0xf]
    %v179 = vld [vmem:[#allocation2 + $0x14] sm:$0xf]
    %v180 = vld [vmem:[#allocation2 + $0x18] sm:$0xf]
    %v181 = vld [vmem:[#allocation2 + $0x1c] sm:$0xf]
    %v182 = vld [vmem:[#allocation2 + $0x20] sm:$0xf]
    %v183 = vld [vmem:[#allocation2 + $0x24] sm:$0xf]
    %v184 = vld [vmem:[#allocation2 + $0x28] sm:$0xf]
    %v185 = vld [vmem:[#allocation2 + $0x2c] sm:$0xf]
    %v186 = vld [vmem:[#allocation2 + $0x30] sm:$0xf]
    %v187 = vld [vmem:[#allocation2 + $0x34] sm:$0xf]
    %v188 = vld [vmem:[#allocation2 + $0x38] sm:$0xf]
    %v189 = vld [vmem:[#allocation2 + $0x3c] sm:$0xf]
    %v190 = vld [vmem:[%s6] sm:$0x1]
    %v192 = vlaneseq
    %v193 = vshrl.u32 %v192, 7
    %v194 = vsub.s32 0, %v193
    %v195 = vrot.slane %v190, %v194
    %v213 = vunpack.c.l.b16 %v174
    %v214 = vunpack.c.l.b16 %v175
    %v215 = vunpack.c.l.b16 %v176
    %v216 = vunpack.c.l.b16 %v177
    %v217 = vunpack.c.l.b16 %v178
    %v218 = vunpack.c.l.b16 %v179
    %v219 = vunpack.c.l.b16 %v180
    %v220 = vunpack.c.l.b16 %v181
    %v221 = vunpack.c.l.b16 %v182
    %v222 = vunpack.c.l.b16 %v183
    %v223 = vunpack.c.l.b16 %v184
    %v224 = vunpack.c.l.b16 %v185
    %v225 = vunpack.c.l.b16 %v186
    %v226 = vunpack.c.l.b16 %v187
    %v227 = vunpack.c.l.b16 %v188
    %v228 = vunpack.c.l.b16 %v189
    %v229 = vpack.c.b16 %v214, %v213
    %v230 = vpack.c.b16 %v216, %v215
    %v231 = vpack.c.b16 %v218, %v217
    %v232 = vpack.c.b16 %v220, %v219
    %v233 = vpack.c.b16 %v222, %v221
    %v234 = vpack.c.b16 %v224, %v223
    %v235 = vpack.c.b16 %v226, %v225
    %v236 = vpack.c.b16 %v228, %v227
    %245 = vmatprep.subr.bf16.mxu0 0
    %246 = vmatpush1.bf16.msra.mxu0 %v229
    %247 = vmatprep.subr.bf16.mxu0 0
    %248 = vmatpush1.bf16.msra.mxu0 %v230
    %249 = vmatprep.subr.bf16.mxu0 0
    %250 = vmatpush1.bf16.msra.mxu0 %v231
    %251 = vmatprep.subr.bf16.mxu0 0
    %252 = vmatpush1.bf16.msra.mxu0 %v232
    %253 = vmatprep.subr.bf16.mxu0 0
    %254 = vmatpush1.bf16.msra.mxu0 %v233
    %255 = vmatprep.subr.bf16.mxu0 0
    %256 = vmatpush1.bf16.msra.mxu0 %v234
    %257 = vmatprep.subr.bf16.mxu0 0
    %258 = vmatpush1.bf16.msra.mxu0 %v235
    %259 = vmatprep.subr.bf16.mxu0 0
    %260 = vmatpush1.bf16.msra.mxu0 %v236
    %261 = vmatprep.subr.bf16.mxu0 0
    %262 = vmatpush1.bf16.msra.mxu0 0
    %263 = vmatprep.subr.bf16.mxu0 0
    %264 = vmatpush1.bf16.msra.mxu0 0
    %265 = vmatprep.subr.bf16.mxu0 0
    %266 = vmatpush1.bf16.msra.mxu0 0
    %267 = vmatprep.subr.bf16.mxu0 0
    %268 = vmatpush1.bf16.msra.mxu0 0
    %269 = vmatprep.subr.bf16.mxu0 0
    %270 = vmatpush1.bf16.msra.mxu0 0
    %271 = vmatprep.subr.bf16.mxu0 0
    %272 = vmatpush1.bf16.msra.mxu0 0
    %273 = vmatprep.subr.bf16.mxu0 0
    %274 = vmatpush1.bf16.msra.mxu0 0
    %275 = vmatprep.subr.bf16.mxu0 0
    %276 = vmatpush1.bf16.msra.mxu0 0
    %277 = vmatprep.mubr.bf16.mxu0 0
    %278 = vmatmul.mubr.bf16.gmra.mrb[0].mxu0 %v173
    %v279 = vpop.f32.mrb[0].mxu0
    %v280 = vadd.f32 %v195, %v279
    %v281 = vpop.f32.mrb[0].mxu0
    %v282 = vpop.f32.mrb[0].mxu0
    %v283 = vpop.f32.mrb[0].mxu0
    %284 = vdwg.mxu0
    %v285 = vmax.f32 %v280, 0.0
    %v286 = vpack.c.bf16 %v285, %v285
    %v287 = vld [vmem:[#allocation5] sm:$0xf]
    %v288 = vld [vmem:[#allocation5 + $0x4] sm:$0xf]
    %v289 = vld [vmem:[#allocation5 + $0x8] sm:$0xf]
    %v290 = vld [vmem:[#allocation5 + $0xc] sm:$0xf]
    %v291 = vld [vmem:[#allocation5 + $0x10] sm:$0xf]
    %v292 = vld [vmem:[#allocation5 + $0x14] sm:$0xf]
    %v293 = vld [vmem:[#allocation5 + $0x18] sm:$0xf]
    %v294 = vld [vmem:[#allocation5 + $0x1c] sm:$0xf]
    %v295 = vld [vmem:[#allocation5 + $0x20] sm:$0xf]
    %v296 = vld [vmem:[#allocation5 + $0x24] sm:$0xf]
    %v297 = vld [vmem:[#allocation5 + $0x28] sm:$0xf]
    %v298 = vld [vmem:[#allocation5 + $0x2c] sm:$0xf]
    %v299 = vld [vmem:[#allocation5 + $0x30] sm:$0xf]
    %v300 = vld [vmem:[#allocation5 + $0x34] sm:$0xf]
    %v301 = vld [vmem:[#allocation5 + $0x38] sm:$0xf]
    %v302 = vld [vmem:[#allocation5 + $0x3c] sm:$0xf]
    %v303 = vld [vmem:[%s8] sm:$0x1]
    %v305 = vlaneseq
    %v306 = vshrl.u32 %v305, 7
    %v307 = vsub.s32 0, %v306
    %v308 = vrot.slane %v303, %v307
    %v326 = vunpack.c.l.b16 %v287
    %v327 = vunpack.c.l.b16 %v288
    %v328 = vunpack.c.l.b16 %v289
    %v329 = vunpack.c.l.b16 %v290
    %v330 = vunpack.c.l.b16 %v291
    %v331 = vunpack.c.l.b16 %v292
    %v332 = vunpack.c.l.b16 %v293
    %v333 = vunpack.c.l.b16 %v294
    %v334 = vunpack.c.l.b16 %v295
    %v335 = vunpack.c.l.b16 %v296
    %v336 = vunpack.c.l.b16 %v297
    %v337 = vunpack.c.l.b16 %v298
    %v338 = vunpack.c.l.b16 %v299
    %v339 = vunpack.c.l.b16 %v300
    %v340 = vunpack.c.l.b16 %v301
    %v341 = vunpack.c.l.b16 %v302
    %v342 = vpack.c.b16 %v327, %v326
    %v343 = vpack.c.b16 %v329, %v328
    %v344 = vpack.c.b16 %v331, %v330
    %v345 = vpack.c.b16 %v333, %v332
    %v346 = vpack.c.b16 %v335, %v334
    %v347 = vpack.c.b16 %v337, %v336
    %v348 = vpack.c.b16 %v339, %v338
    %v349 = vpack.c.b16 %v341, %v340
    %358 = vmatprep.subr.bf16.mxu0 0
    %359 = vmatpush1.bf16.msra.mxu0 %v342
    %360 = vmatprep.subr.bf16.mxu0 0
    %361 = vmatpush1.bf16.msra.mxu0 %v343
    %362 = vmatprep.subr.bf16.mxu0 0
    %363 = vmatpush1.bf16.msra.mxu0 %v344
    %364 = vmatprep.subr.bf16.mxu0 0
    %365 = vmatpush1.bf16.msra.mxu0 %v345
    %366 = vmatprep.subr.bf16.mxu0 0
    %367 = vmatpush1.bf16.msra.mxu0 %v346
    %368 = vmatprep.subr.bf16.mxu0 0
    %369 = vmatpush1.bf16.msra.mxu0 %v347
    %370 = vmatprep.subr.bf16.mxu0 0
    %371 = vmatpush1.bf16.msra.mxu0 %v348
    %372 = vmatprep.subr.bf16.mxu0 0
    %373 = vmatpush1.bf16.msra.mxu0 %v349
    %374 = vmatprep.subr.bf16.mxu0 0
    %375 = vmatpush1.bf16.msra.mxu0 0
    %376 = vmatprep.subr.bf16.mxu0 0
    %377 = vmatpush1.bf16.msra.mxu0 0
    %378 = vmatprep.subr.bf16.mxu0 0
    %379 = vmatpush1.bf16.msra.mxu0 0
    %380 = vmatprep.subr.bf16.mxu0 0
    %381 = vmatpush1.bf16.msra.mxu0 0
    %382 = vmatprep.subr.bf16.mxu0 0
    %383 = vmatpush1.bf16.msra.mxu0 0
    %384 = vmatprep.subr.bf16.mxu0 0
    %385 = vmatpush1.bf16.msra.mxu0 0
    %386 = vmatprep.subr.bf16.mxu0 0
    %387 = vmatpush1.bf16.msra.mxu0 0
    %388 = vmatprep.subr.bf16.mxu0 0
    %389 = vmatpush1.bf16.msra.mxu0 0
    %390 = vmatprep.mubr.bf16.mxu0 0
    %391 = vmatmul.mubr.bf16.gmra.mrb[0].mxu0 %v286
    %v392 = vpop.f32.mrb[0].mxu0
    %v393 = vadd.f32 %v308, %v392
    %v394 = vpop.f32.mrb[0].mxu0
    %v395 = vpop.f32.mrb[0].mxu0
    %v396 = vpop.f32.mrb[0].mxu0
    %397 = vdwg.mxu0
    %398 = vst [vmem:[#allocation7] sm:$0xff] %v393
    // Predicated region
    $region46: #{tpu_custom_call.1} parent=1 // pred_check
      _
    $region47: #{tpu_custom_call.1} parent=1 // pred_check_branch
      %400 = sbr.rel (0) target = $region49
    $region48: #{tpu_custom_call.1} parent=1 // pred_region
      %s402 = ssub.s32 128, 128
      %403 = vsyncadd [#allocation4], %s402
      %s405 = sshll.u32 [#allocation7], 4
      %s406 = int_to_ptr.vmem [resolvable:$true] %s405
      %408 = dma.vmem_to_hbm [thread:$0]  %s406, 128, %s9, [#allocation4]
    $region49: #{tpu_custom_call.1} parent=1 // pred_fallthru
      _
    // Predicated region
    $region50: #{tpu_custom_call.1} parent=1 // pred_check
      _
    $region51: #{tpu_custom_call.1} parent=1 // pred_check_branch
      %410 = sbr.rel (0) target = $region53
    $region52: #{tpu_custom_call.1} parent=1 // pred_region
      %411 = dma.done [#allocation4], 128
    $region53: #{tpu_custom_call.1} parent=1 // pred_fallthru
      _
    %412 = vsyncpa [#allocation3], 1
    %413 = vsyncpa [#allocation6], 1
    %414 = vsyncpa [#allocation4], 1

</llo_original>
